<compile_context>
chip_gen: v7x
topology: tpu7x:2x2x1
jax: 0.10.0
libtpu: 0.0.40
codegen_flags: <defaults>
</compile_context>

<pallas_src>
import functools

import jax
import jax.numpy as jnp
from jax.experimental import pallas as pl
from jax.experimental.pallas import tpu as pltpu


FOLD = 12  # batch rows folded into the lane axis: 10 -> 120 in-lanes, 5 -> 60 out-lanes


def _cdiv(a, b):
    return -(-a // b)


def _round_up(n, m):
    return _cdiv(n, m) * m


def toy_model_kernel(x_ref, w1_ref, b1_ref, w2_ref, b2_ref, o_ref):
    """One tile of folded rows: y = relu(x @ W1_bd + b1) @ W2_bd + b2 (all f32).

    Weights/biases are resident (constant index_map) block-diagonal operands;
    matmuls run on the MXU with f32 accumulation, epilogue stays f32 (v5e-safe).
    """
    h = jnp.dot(x_ref[...], w1_ref[...], preferred_element_type=jnp.float32)
    h = jnp.maximum(h + b1_ref[...], 0.0)
    y = jnp.dot(h, w2_ref[...], preferred_element_type=jnp.float32) + b2_ref[...]
    o_ref[...] = y.astype(o_ref.dtype)


@functools.partial(jax.jit, static_argnames=("block_rows",))
def toy_model_forward(x, w1, b1, w2, b2, *, block_rows=2048):
    """x: (B, 10) f32 -> (B, 5) f32. Weights stored as (in, out) (transposed vs torch)."""
    B, in_dim = x.shape
    hid_dim = w1.shape[1]
    out_dim = w2.shape[1]
    block_rows = _round_up(block_rows, 8)

    # --- lane-densify: fold FOLD rows into the lane axis (free row-major reshape) ---
    b_pad = _round_up(B, FOLD)
    xw = x if b_pad == B else jnp.pad(x, ((0, b_pad - B), (0, 0)))  # <= FOLD-1 pad rows
    n_rows = b_pad // FOLD
    xw = xw.reshape(n_rows, FOLD * in_dim)                          # metadata-only reshape

    # Block-diagonal resident weights: each folded row is an independent copy of
    # the original 10 -> 10 -> 5 network.
    w1_bd = jnp.kron(jnp.eye(FOLD, dtype=w1.dtype), w1)             # (120, 120)
    w2_bd = jnp.kron(jnp.eye(FOLD, dtype=w2.dtype), w2)             # (120,  60)
    b1_t = jnp.tile(jnp.reshape(b1, (1, hid_dim)), (1, FOLD))        # (1, 120)
    b2_t = jnp.tile(jnp.reshape(b2, (1, out_dim)), (1, FOLD))        # (1,  60)

    # --- row tile over folded rows ---
    # Big enough to amortize ~0.35us/step grid overhead, small enough for every
    # generation's VMEM; aim for >=4 grid steps so both TensorCores get work on v7x.
    if n_rows <= 8:
        tm = n_rows                                   # single full-extent block
    else:
        tm = min(block_rows, max(8, _round_up(_cdiv(n_rows, 4), 8)))
    grid = (_cdiv(n_rows, tm),)                        # ragged last block handled by Pallas

    y = pl.pallas_call(
        toy_model_kernel,
        out_shape=jax.ShapeDtypeStruct((n_rows, FOLD * out_dim), jnp.float32),
        grid=grid,
        in_specs=[
            pl.BlockSpec((tm, FOLD * in_dim), lambda i: (i, 0)),   # batch-tiled activations
            pl.BlockSpec(w1_bd.shape, lambda i: (0, 0)),           # resident W1 block-diag
            pl.BlockSpec(b1_t.shape, lambda i: (0, 0)),            # resident b1
            pl.BlockSpec(w2_bd.shape, lambda i: (0, 0)),           # resident W2 block-diag
            pl.BlockSpec(b2_t.shape, lambda i: (0, 0)),            # resident b2
        ],
        out_specs=pl.BlockSpec((tm, FOLD * out_dim), lambda i: (i, 0)),
        compiler_params=pltpu.CompilerParams(
            dimension_semantics=("parallel",),         # shard batch tiles across TCs (v7x)
            vmem_limit_bytes=32 * 1024 * 1024,
        ),
    )(xw, w1_bd, b1_t, w2_bd, b2_t)

    y = y.reshape(b_pad, out_dim)                      # metadata-only reshape
    return y if b_pad == B else y[:B]


def reference_forward(x, w1, b1, w2, b2):
    """Pure-JAX f32 reference (highest-precision dots) mirroring the PyTorch module."""
    hi = jax.lax.Precision.HIGHEST
    h = jnp.maximum(jnp.dot(x, w1, precision=hi) + b1, 0.0)
    return jnp.dot(h, w2, precision=hi) + b2


def init_linear_params(key, in_features, out_features):
    """Matches PyTorch nn.Linear default init: U(-1/sqrt(fan_in), 1/sqrt(fan_in)).
    Weight is returned as (in, out) (transposed vs. PyTorch's (out, in))."""
    kw, kb = jax.random.split(key)
    bound = 1.0 / (in_features ** 0.5)
    w = jax.random.uniform(kw, (in_features, out_features),
                           minval=-bound, maxval=bound, dtype=jnp.float32)
    b = jax.random.uniform(kb, (1, out_features),
                           minval=-bound, maxval=bound, dtype=jnp.float32)
    return w, b


if __name__ == "__main__":
    key = jax.random.PRNGKey(0)
    k_x, k_l1, k_l2 = jax.random.split(key, 3)

    batch, in_dim, hid_dim, out_dim = 8, 10, 10, 5

    x = jax.random.normal(k_x, (batch, in_dim), dtype=jnp.float32)
    w1, b1 = init_linear_params(k_l1, in_dim, hid_dim)
    w2, b2 = init_linear_params(k_l2, hid_dim, out_dim)

    # Small demo batch (B % 12 != 0 -> exercises the tiny fold pad + slice path).
    y = jax.block_until_ready(toy_model_forward(x, w1, b1, w2, b2))
    assert y.shape == (batch, out_dim)
    # Tolerance covers MXU f32 (multi-pass) vs. highest-precision XLA dots.
    assert jnp.allclose(y, reference_forward(x, w1, b1, w2, b2), atol=5e-3, rtol=5e-3)

    # Other batch shapes:
    #  - B=13: ragged, not a multiple of FOLD.
    #  - B=1000: pads to 1008 -> 84 folded rows, tile=24, grid=4 with a partial last
    #    block (no tile-level wrapper padding; Pallas clips the ragged edge).
    for B in (13, 1000):
        xb = jax.random.normal(jax.random.PRNGKey(B), (B, in_dim), dtype=jnp.float32)
        yb = jax.block_until_ready(toy_model_forward(xb, w1, b1, w2, b2))
        assert yb.shape == (B, out_dim)
        assert jnp.allclose(yb, reference_forward(xb, w1, b1, w2, b2),
                            atol=5e-3, rtol=5e-3)

    print("KERNEL_OK")
</pallas_src>

<mosaic_0001>
module attributes {stable_mosaic.version = 11 : i64} {
  func.func @toy_model_kernel(%arg0: i32, %arg1: memref<1x120xf32, #tpu.memory_space<vmem>>, %arg2: memref<120x120xf32, #tpu.memory_space<vmem>>, %arg3: memref<1x120xf32, #tpu.memory_space<vmem>>, %arg4: memref<120x60xf32, #tpu.memory_space<vmem>>, %arg5: memref<1x60xf32, #tpu.memory_space<vmem>>, %arg6: memref<1x60xf32, #tpu.memory_space<vmem>>) attributes {dimension_semantics = [#tpu.dimension_semantics<parallel>], iteration_bounds = array<i64: 1>, scalar_prefetch = 0 : i64, scratch_operands = 0 : i64, tpu.core_type = #tpu.core_type<tc>, window_params = [{transform_indices = @transform_0, window_bounds = array<i64: 1, 120>}, {pipeline_mode = #tpu.pipeline_mode<synchronous>, transform_indices = @transform_1, window_bounds = array<i64: 120, 120>}, {pipeline_mode = #tpu.pipeline_mode<synchronous>, transform_indices = @transform_2, window_bounds = array<i64: 1, 120>}, {pipeline_mode = #tpu.pipeline_mode<synchronous>, transform_indices = @transform_3, window_bounds = array<i64: 120, 60>}, {pipeline_mode = #tpu.pipeline_mode<synchronous>, transform_indices = @transform_4, window_bounds = array<i64: 1, 60>}, {transform_indices = @transform_5, window_bounds = array<i64: 1, 60>}]} {
    %c0 = arith.constant 0 : index
    %c0_0 = arith.constant 0 : index
    %0 = vector.load %arg1[%c0, %c0_0] : memref<1x120xf32, #tpu.memory_space<vmem>>, vector<1x120xf32>
    %c0_1 = arith.constant 0 : index
    %c0_2 = arith.constant 0 : index
    %1 = vector.load %arg2[%c0_1, %c0_2] : memref<120x120xf32, #tpu.memory_space<vmem>>, vector<120x120xf32>
    %cst = arith.constant dense<0.000000e+00> : vector<1x120xf32>
    %2 = tpu.matmul %0, %1, %cst {dimension_numbers = #tpu.dot_dimension_numbers<[1], [0], [0], [1], [0, 0, 1, 1], [], []>} : vector<1x120xf32>, vector<120x120xf32>, vector<1x120xf32> -> vector<1x120xf32>
    %c0_3 = arith.constant 0 : index
    %c0_4 = arith.constant 0 : index
    %3 = vector.load %arg3[%c0_3, %c0_4] : memref<1x120xf32, #tpu.memory_space<vmem>>, vector<1x120xf32>
    %4 = arith.addf %2, %3 : vector<1x120xf32>
    %cst_5 = arith.constant 0.000000e+00 : f32
    %5 = vector.broadcast %cst_5 : f32 to vector<1x120xf32>
    %6 = arith.maximumf %4, %5 : vector<1x120xf32>
    %c0_6 = arith.constant 0 : index
    %c0_7 = arith.constant 0 : index
    %7 = vector.load %arg4[%c0_6, %c0_7] : memref<120x60xf32, #tpu.memory_space<vmem>>, vector<120x60xf32>
    %cst_8 = arith.constant dense<0.000000e+00> : vector<1x60xf32>
    %8 = tpu.matmul %6, %7, %cst_8 {dimension_numbers = #tpu.dot_dimension_numbers<[1], [0], [0], [1], [0, 0, 1, 1], [], []>} : vector<1x120xf32>, vector<120x60xf32>, vector<1x60xf32> -> vector<1x60xf32>
    %c0_9 = arith.constant 0 : index
    %c0_10 = arith.constant 0 : index
    %9 = vector.load %arg5[%c0_9, %c0_10] : memref<1x60xf32, #tpu.memory_space<vmem>>, vector<1x60xf32>
    %10 = arith.addf %8, %9 : vector<1x60xf32>
    %c0_11 = arith.constant 0 : index
    %c0_12 = arith.constant 0 : index
    %11 = vector.load %arg6[%c0_11, %c0_12] : memref<1x60xf32, #tpu.memory_space<vmem>>, vector<1x60xf32>
    tpu.vector_store %arg6[%c0_11, %c0_12], %10 {strides = array<i32>} : memref<1x60xf32, #tpu.memory_space<vmem>>, vector<1x60xf32>,
    return
  }
  func.func @transform_0(%arg0: i32) -> (i32, i32) {
    %c0_i32 = arith.constant 0 : i32
    %c0_i32_0 = arith.constant 0 : i32
    return %arg0, %c0_i32 : i32, i32
  }
  func.func @transform_1(%arg0: i32) -> (i32, i32) {
    %c0_i32 = arith.constant 0 : i32
    %c0_i32_0 = arith.constant 0 : i32
    %c0_i32_1 = arith.constant 0 : i32
    return %c0_i32, %c0_i32_0 : i32, i32
  }
  func.func @transform_2(%arg0: i32) -> (i32, i32) {
    %c0_i32 = arith.constant 0 : i32
    %c0_i32_0 = arith.constant 0 : i32
    %c0_i32_1 = arith.constant 0 : i32
    return %c0_i32, %c0_i32_0 : i32, i32
  }
  func.func @transform_3(%arg0: i32) -> (i32, i32) {
    %c0_i32 = arith.constant 0 : i32
    %c0_i32_0 = arith.constant 0 : i32
    %c0_i32_1 = arith.constant 0 : i32
    return %c0_i32, %c0_i32_0 : i32, i32
  }
  func.func @transform_4(%arg0: i32) -> (i32, i32) {
    %c0_i32 = arith.constant 0 : i32
    %c0_i32_0 = arith.constant 0 : i32
    %c0_i32_1 = arith.constant 0 : i32
    return %c0_i32, %c0_i32_0 : i32, i32
  }
  func.func @transform_5(%arg0: i32) -> (i32, i32) {
    %c0_i32 = arith.constant 0 : i32
    %c0_i32_0 = arith.constant 0 : i32
    return %arg0, %c0_i32 : i32, i32
  }
}

</mosaic_0001>

<llo_original>
// kernel: toy_model_forward.1
$region0: #{toy_model_forward.1}
  #allocation0 [shape = 'u32[]', space=smem, size = 0x4, offset = 0x4, fixed_abs, tag = 'smem constant byte address 0x4 - core index']
  #allocation1 [shape = 'u32[144,128]{1,0:T(1,128)}', space=vmem, size = 0x12000, scoped, tag = 'internal scratch']
  %s0 = inlined_call_operand.vmem [shape: f32[1,120], index: 0, kind: input, shape index: {}]
  %s1 = inlined_call_operand.vmem [shape: f32[120,120], index: 1, kind: input, shape index: {}]
  %s2 = inlined_call_operand.vmem [shape: f32[1,120], index: 2, kind: input, shape index: {}]
  %s3 = inlined_call_operand.vmem [shape: f32[120,60], index: 3, kind: input, shape index: {}]
  %s4 = inlined_call_operand.vmem [shape: f32[1,60], index: 4, kind: input, shape index: {}]
  %s5 = inlined_call_operand.vmem [shape: f32[1,60], index: 5, kind: output, shape index: {}]
  %s6 = sld [smem:[#allocation0]]
  $region30: #{toy_model_forward.1} parent=0
    _
  %s8 = ssub.s32 1, %s6
  %s9 = scalar_select 0, %s8, %s6
  // Predicated region
  $region2: #{toy_model_forward.1} parent=0 // pred_check
    _
  $region3: #{toy_model_forward.1} parent=0 // pred_check_branch
    %11 = sbr.rel (0) target = $region5
  $region4: #{toy_model_forward.1} parent=0 // pred_region
    _
  $region5: #{toy_model_forward.1} parent=0 // pred_fallthru
    _
  // Predicated region
  $region6: #{toy_model_forward.1} parent=0 // pred_check
    _
  $region7: #{toy_model_forward.1} parent=0 // pred_check_branch
    %13 = sbr.rel (0) target = $region9
  $region8: #{toy_model_forward.1} parent=0 // pred_region
    _
  $region9: #{toy_model_forward.1} parent=0 // pred_fallthru
    _
  // Predicated region
  $region10: #{toy_model_forward.1} parent=0 // pred_check
    _
  $region11: #{toy_model_forward.1} parent=0 // pred_check_branch
    %15 = sbr.rel (0) target = $region13
  $region12: #{toy_model_forward.1} parent=0 // pred_region
    _
  $region13: #{toy_model_forward.1} parent=0 // pred_fallthru
    _
  // Predicated region
  $region14: #{toy_model_forward.1} parent=0 // pred_check
    _
  $region15: #{toy_model_forward.1} parent=0 // pred_check_branch
    %17 = sbr.rel (0) target = $region17
  $region16: #{toy_model_forward.1} parent=0 // pred_region
    _
  $region17: #{toy_model_forward.1} parent=0 // pred_fallthru
    _
  // Predicated region
  $region18: #{toy_model_forward.1} parent=0 // pred_check
    _
  $region19: #{toy_model_forward.1} parent=0 // pred_check_branch
    %19 = sbr.rel (0) target = $region21
  $region20: #{toy_model_forward.1} parent=0 // pred_region
    _
  $region21: #{toy_model_forward.1} parent=0 // pred_fallthru
    _
  %v20 = vld [vmem:[%s0] sm:$0x1]
  %v21 = vld [vmem:[%s1] sm:$0xff]
  %v22 = vld [vmem:[%s1 + $0x8] sm:$0xff]
  %v23 = vld [vmem:[%s1 + $0x10] sm:$0xff]
  %v24 = vld [vmem:[%s1 + $0x18] sm:$0xff]
  %v25 = vld [vmem:[%s1 + $0x20] sm:$0xff]
  %v26 = vld [vmem:[%s1 + $0x28] sm:$0xff]
  %v27 = vld [vmem:[%s1 + $0x30] sm:$0xff]
  %v28 = vld [vmem:[%s1 + $0x38] sm:$0xff]
  %v29 = vld [vmem:[%s1 + $0x40] sm:$0xff]
  %v30 = vld [vmem:[%s1 + $0x48] sm:$0xff]
  %v31 = vld [vmem:[%s1 + $0x50] sm:$0xff]
  %v32 = vld [vmem:[%s1 + $0x58] sm:$0xff]
  %v33 = vld [vmem:[%s1 + $0x60] sm:$0xff]
  %v34 = vld [vmem:[%s1 + $0x68] sm:$0xff]
  %v35 = vld [vmem:[%s1 + $0x70] sm:$0xff]
  %v36 = vld [vmem:[%s2] sm:$0x1]
  %vm37 = vcmask 982016
  %v39 = vsel %vm37, %v20, 0
  %41 = vmatprep.subr.mxu0 0.0
  %42 = vmatpush1.msra.mxu0 %v21
  %43 = vmatprep.subr.mxu0 0.0
  %44 = vmatpush1.msra.mxu0 %v22
  %45 = vmatprep.subr.mxu0 0.0
  %46 = vmatpush1.msra.mxu0 %v23
  %47 = vmatprep.subr.mxu0 0.0
  %48 = vmatpush1.msra.mxu0 %v24
  %49 = vmatprep.subr.mxu0 0.0
  %50 = vmatpush1.msra.mxu0 %v25
  %51 = vmatprep.subr.mxu0 0.0
  %52 = vmatpush1.msra.mxu0 %v26
  %53 = vmatprep.subr.mxu0 0.0
  %54 = vmatpush1.msra.mxu0 %v27
  %55 = vmatprep.subr.mxu0 0.0
  %56 = vmatpush1.msra.mxu0 %v28
  %57 = vmatprep.subr.mxu0 0.0
  %58 = vmatpush1.msra.mxu0 %v29
  %59 = vmatprep.subr.mxu0 0.0
  %60 = vmatpush1.msra.mxu0 %v30
  %61 = vmatprep.subr.mxu0 0.0
  %62 = vmatpush1.msra.mxu0 %v31
  %63 = vmatprep.subr.mxu0 0.0
  %64 = vmatpush1.msra.mxu0 %v32
  %65 = vmatprep.subr.mxu0 0.0
  %66 = vmatpush1.msra.mxu0 %v33
  %67 = vmatprep.subr.mxu0 0.0
  %68 = vmatpush1.msra.mxu0 %v34
  %69 = vmatprep.subr.mxu0 0.0
  %70 = vmatpush1.msra.mxu0 %v35
  %71 = vmatprep.subr.mxu0 0.0
  %72 = vmatpush1.msra.mxu0 0.0
  %73 = vmatprep.subr.mxu0 0.0
  %74 = vmatpush1.msra.mxu0 0.0
  %75 = vmatprep.subr.mxu0 0.0
  %76 = vmatpush1.msra.mxu0 0.0
  %77 = vmatprep.subr.mxu0 0.0
  %78 = vmatpush1.msra.mxu0 0.0
  %79 = vmatprep.subr.mxu0 0.0
  %80 = vmatpush1.msra.mxu0 0.0
  %81 = vmatprep.subr.mxu0 0.0
  %82 = vmatpush1.msra.mxu0 0.0
  %83 = vmatprep.subr.mxu0 0.0
  %84 = vmatpush1.msra.mxu0 0.0
  %85 = vmatprep.subr.mxu0 0.0
  %86 = vmatpush1.msra.mxu0 0.0
  %87 = vmatprep.subr.mxu0 0.0
  %88 = vmatpush1.msra.mxu0 0.0
  %89 = vmatprep.subr.mxu0 0.0
  %90 = vmatpush1.msra.mxu0 0.0
  %91 = vmatprep.subr.mxu0 0.0
  %92 = vmatpush1.msra.mxu0 0.0
  %93 = vmatprep.subr.mxu0 0.0
  %94 = vmatpush1.msra.mxu0 0.0
  %95 = vmatprep.subr.mxu0 0.0
  %96 = vmatpush1.msra.mxu0 0.0
  %97 = vmatprep.subr.mxu0 0.0
  %98 = vmatpush1.msra.mxu0 0.0
  %99 = vmatprep.subr.mxu0 0.0
  %100 = vmatpush1.msra.mxu0 0.0
  %101 = vmatprep.subr.mxu0 0.0
  %102 = vmatpush1.msra.mxu0 0.0
  %103 = vmatprep.subr.mxu0 0.0
  %104 = vmatpush1.msra.mxu0 0.0
  %105 = vmatprep.mubr.f32.mxu0 0.0
  %106 = vmatmul.mubr.f32.gmra.mrb[0].mxu0 %v39
  %v107 = vpop.f32.mrb[0].mxu0
  %v108 = vadd.f32 %v36, %v107
  %v109 = vpop.f32.mrb[0].mxu0
  %110 = vdwg.mxu0
  %v111 = vmax.f32 %v108, 0.0
  %v112 = vld [vmem:[%s3] sm:$0xff]
  %v113 = vld [vmem:[%s3 + $0x8] sm:$0xff]
  %v114 = vld [vmem:[%s3 + $0x10] sm:$0xff]
  %v115 = vld [vmem:[%s3 + $0x18] sm:$0xff]
  %v116 = vld [vmem:[%s3 + $0x20] sm:$0xff]
  %v117 = vld [vmem:[%s3 + $0x28] sm:$0xff]
  %v118 = vld [vmem:[%s3 + $0x30] sm:$0xff]
  %v119 = vld [vmem:[%s3 + $0x38] sm:$0xff]
  %v120 = vld [vmem:[%s3 + $0x40] sm:$0xff]
  %v121 = vld [vmem:[%s3 + $0x48] sm:$0xff]
  %v122 = vld [vmem:[%s3 + $0x50] sm:$0xff]
  %v123 = vld [vmem:[%s3 + $0x58] sm:$0xff]
  %v124 = vld [vmem:[%s3 + $0x60] sm:$0xff]
  %v125 = vld [vmem:[%s3 + $0x68] sm:$0xff]
  %v126 = vld [vmem:[%s3 + $0x70] sm:$0xff]
  %v127 = vld [vmem:[%s4] sm:$0x1]
  %v129 = vsel %vm37, %v111, 0
  %131 = vmatprep.subr.mxu0 0.0
  %132 = vmatpush1.msra.mxu0 %v112
  %133 = vmatprep.subr.mxu0 0.0
  %134 = vmatpush1.msra.mxu0 %v113
  %135 = vmatprep.subr.mxu0 0.0
  %136 = vmatpush1.msra.mxu0 %v114
  %137 = vmatprep.subr.mxu0 0.0
  %138 = vmatpush1.msra.mxu0 %v115
  %139 = vmatprep.subr.mxu0 0.0
  %140 = vmatpush1.msra.mxu0 %v116
  %141 = vmatprep.subr.mxu0 0.0
  %142 = vmatpush1.msra.mxu0 %v117
  %143 = vmatprep.subr.mxu0 0.0
  %144 = vmatpush1.msra.mxu0 %v118
  %145 = vmatprep.subr.mxu0 0.0
  %146 = vmatpush1.msra.mxu0 %v119
  %147 = vmatprep.subr.mxu0 0.0
  %148 = vmatpush1.msra.mxu0 %v120
  %149 = vmatprep.subr.mxu0 0.0
  %150 = vmatpush1.msra.mxu0 %v121
  %151 = vmatprep.subr.mxu0 0.0
  %152 = vmatpush1.msra.mxu0 %v122
  %153 = vmatprep.subr.mxu0 0.0
  %154 = vmatpush1.msra.mxu0 %v123
  %155 = vmatprep.subr.mxu0 0.0
  %156 = vmatpush1.msra.mxu0 %v124
  %157 = vmatprep.subr.mxu0 0.0
  %158 = vmatpush1.msra.mxu0 %v125
  %159 = vmatprep.subr.mxu0 0.0
  %160 = vmatpush1.msra.mxu0 %v126
  %161 = vmatprep.subr.mxu0 0.0
  %162 = vmatpush1.msra.mxu0 0.0
  %163 = vmatprep.subr.mxu0 0.0
  %164 = vmatpush1.msra.mxu0 0.0
  %165 = vmatprep.subr.mxu0 0.0
  %166 = vmatpush1.msra.mxu0 0.0
  %167 = vmatprep.subr.mxu0 0.0
  %168 = vmatpush1.msra.mxu0 0.0
  %169 = vmatprep.subr.mxu0 0.0
  %170 = vmatpush1.msra.mxu0 0.0
  %171 = vmatprep.subr.mxu0 0.0
  %172 = vmatpush1.msra.mxu0 0.0
  %173 = vmatprep.subr.mxu0 0.0
  %174 = vmatpush1.msra.mxu0 0.0
  %175 = vmatprep.subr.mxu0 0.0
  %176 = vmatpush1.msra.mxu0 0.0
  %177 = vmatprep.subr.mxu0 0.0
  %178 = vmatpush1.msra.mxu0 0.0
  %179 = vmatprep.subr.mxu0 0.0
  %180 = vmatpush1.msra.mxu0 0.0
  %181 = vmatprep.subr.mxu0 0.0
  %182 = vmatpush1.msra.mxu0 0.0
  %183 = vmatprep.subr.mxu0 0.0
  %184 = vmatpush1.msra.mxu0 0.0
  %185 = vmatprep.subr.mxu0 0.0
  %186 = vmatpush1.msra.mxu0 0.0
  %187 = vmatprep.subr.mxu0 0.0
  %188 = vmatpush1.msra.mxu0 0.0
  %189 = vmatprep.subr.mxu0 0.0
  %190 = vmatpush1.msra.mxu0 0.0
  %191 = vmatprep.subr.mxu0 0.0
  %192 = vmatpush1.msra.mxu0 0.0
  %193 = vmatprep.subr.mxu0 0.0
  %194 = vmatpush1.msra.mxu0 0.0
  %195 = vmatprep.mubr.f32.mxu0 0.0
  %196 = vmatmul.mubr.f32.gmra.mrb[0].mxu0 %v129
  %v197 = vpop.f32.mrb[0].mxu0
  %v198 = vadd.f32 %v127, %v197
  %v199 = vpop.f32.mrb[0].mxu0
  %200 = vdwg.mxu0
  %vm201 = vcmask 483328
  %202 = vst.msk [vmem:[%s5] sm:$0x1] %vm201, %v198
  // Predicated region
  $region22: #{toy_model_forward.1} parent=0 // pred_check
    _
  $region23: #{toy_model_forward.1} parent=0 // pred_check_branch
    %204 = sbr.rel (0) target = $region25
  $region24: #{toy_model_forward.1} parent=0 // pred_region
    _
  $region25: #{toy_model_forward.1} parent=0 // pred_fallthru
    _
  // Predicated region
  $region26: #{toy_model_forward.1} parent=0 // pred_check
    _
  $region27: #{toy_model_forward.1} parent=0 // pred_check_branch
    %206 = sbr.rel (0) target = $region29
  $region28: #{toy_model_forward.1} parent=0 // pred_region
    _
  $region29: #{toy_model_forward.1} parent=0 // pred_fallthru
    _

</llo_original>
